<compile_context>
chip_gen: v5e
topology: v5e:2x2
jax: 0.10.0
libtpu: 0.0.40
codegen_flags: <defaults>
</compile_context>

<pallas_src>
import jax
import jax.numpy as jnp
from jax.experimental import pallas as pl
from jax.experimental.pallas import tpu as pltpu


def _round_up(x, m):
    return ((x + m - 1) // m) * m


def _clf_kernel(x_ref, w_ref, bias_ref, temb_ref, scale_ref, o_ref, acc_ref):
    # grid = (num_f [outer, "arbitrary" reduction], num_b [inner, "parallel"])
    #   x_ref     : (tile_b, tile_f)        f32   raw flattened image block (cast in-kernel)
    #   w_ref     : (tile_f, D_pad)         bf16  folded weights  W' = diag(1/std) @ W
    #   bias_ref  : (1, D_pad)              f32   folded bias     b  = -(mean/std) @ W
    #   temb_ref  : (D_pad, K_pad)          bf16  text embedding
    #   scale_ref : (1, 1)                  f32   exp(logit_scale)
    #   o_ref     : (tile_b, K_pad)         f32   logits
    #   acc_ref   : (num_b, tile_b, D_pad)  f32   persistent per-B-tile accumulators
    f_idx = pl.program_id(0)
    b_idx = pl.program_id(1)

    @pl.when(f_idx == 0)
    def _init():
        acc_ref[b_idx] = jnp.zeros(acc_ref.shape[1:], acc_ref.dtype)

    xb = x_ref[...].astype(jnp.bfloat16)          # in-kernel VPU cast, hidden under DMA/MXU
    acc_ref[b_idx] = acc_ref[b_idx] + jnp.dot(
        xb, w_ref[...], preferred_element_type=jnp.float32)

    @pl.when(f_idx == pl.num_programs(0) - 1)
    def _finalize():
        emb = acc_ref[b_idx] + bias_ref[...]      # synthetic encode_image (normalize folded)
        inv = jax.lax.rsqrt(jnp.sum(emb * emb, axis=-1, keepdims=True) + 1e-12)
        emb_n = (emb * inv).astype(jnp.bfloat16)  # L2-normalize (EUP rsqrt), bf16 for MXU
        logits = jnp.dot(emb_n, temb_ref[...],    # bf16 x bf16, f32 accumulate
                         preferred_element_type=jnp.float32)
        o_ref[...] = logits * scale_ref[0, 0]     # exp(logit_scale) post-matmul in f32


def prepare_weights(mean, std, w_enc, text_emb, logit_scale, *,
                    use_logit_scale=True, tile_f=None, weight_dtype=jnp.bfloat16):
    """One-time prepack (call once per model; reuse across forward calls)."""
    F, D = w_enc.shape
    D2, K = text_emb.shape
    assert D2 == D
    C = mean.shape[0]
    hw = F // C
    f32 = jnp.float32

    # Exact fold of (x - mean) / std into the linear encoder (NCHW flatten order).
    mean_f = jnp.repeat(mean.astype(f32), hw)
    std_f = jnp.repeat(std.astype(f32), hw)
    w_fold = w_enc.astype(f32) / std_f[:, None]               # W' = diag(1/std) @ W
    bias = -(mean_f / std_f) @ w_enc.astype(f32)               # b  = -(mean/std) @ W
    scale = jnp.exp(jnp.asarray(logit_scale, f32)) if use_logit_scale \
        else jnp.asarray(1.0, f32)

    # MXU / DMA friendly padding (all exact: zero columns/rows contribute nothing).
    D_pad = _round_up(D, 128)
    K_pad = _round_up(K, 128)
    F_128 = _round_up(F, 128)
    tile_f = tile_f if tile_f is not None else min(F_128, 2048)
    tile_f = min(_round_up(tile_f, 128), F_128)
    F_pad = _round_up(F_128, tile_f)

    w_fold = jnp.pad(w_fold, ((0, F_pad - F), (0, D_pad - D))).astype(weight_dtype)
    bias = jnp.pad(bias, (0, D_pad - D)).reshape(1, D_pad)
    temb = jnp.pad(text_emb.astype(f32),
                   ((0, D_pad - D), (0, K_pad - K))).astype(weight_dtype)
    scale = scale.reshape(1, 1)

    return dict(w_fold=w_fold, bias=bias, temb=temb, scale=scale,
                F=F, D=D, K=K, F_pad=F_pad, D_pad=D_pad, K_pad=K_pad, tile_f=tile_f)


def classification_forward(image, pack, *, tile_b=None):
    """image: (B, C, H, W) float32 NCHW. Returns logits (B, K) float32."""
    B, C, H, W = image.shape
    F = C * H * W
    assert F == pack["F"], "image shape inconsistent with prepacked weights"
    F_pad, D_pad, K_pad = pack["F_pad"], pack["D_pad"], pack["K_pad"]
    tile_f, K = pack["tile_f"], pack["K"]

    B_pad8 = _round_up(B, 8)
    tile_b = tile_b if tile_b is not None else min(B_pad8, 256)
    tile_b = _round_up(min(tile_b, B_pad8), 8)
    B_pad = _round_up(B_pad8, tile_b)
    num_b = B_pad // tile_b
    num_f = F_pad // tile_f

    # Image streamed in f32 (bf16 cast happens in-kernel); zero padding is exact.
    x = jnp.pad(image.reshape(B, F).astype(jnp.float32),
                ((0, B_pad - B), (0, F_pad - F)))

    # VMEM budget derived from actual buffer sizes, capped for v7x's 64 MiB physical.
    vmem_bytes = (2 * tile_b * tile_f * 4          # x blocks (double-buffered, f32)
                  + 2 * tile_f * D_pad * 2          # W blocks (double-buffered, bf16)
                  + 2 * D_pad * 4                   # bias (constant block)
                  + 2 * D_pad * K_pad * 2           # text embedding (constant block, bf16)
                  + 2 * tile_b * K_pad * 4          # output blocks
                  + B_pad * D_pad * 4)              # persistent accumulator scratch
    vmem_limit = min(64 * 1024 * 1024,
                     max(32 * 1024 * 1024, int(vmem_bytes * 1.5) + (4 << 20)))

    cost = pl.CostEstimate(
        flops=2 * B_pad * F_pad * D_pad + 2 * B_pad * D_pad * K_pad,
        transcendentals=B_pad,
        bytes_accessed=(B_pad * F_pad * 4            # image, read once
                        + F_pad * D_pad * 2          # W, read once (F-outer grid)
                        + D_pad * K_pad * 2 + D_pad * 4 + 8
                        + num_f * B_pad * K_pad * 4  # output block writebacks
                        ),
    )

    out = pl.pallas_call(
        _clf_kernel,
        out_shape=jax.ShapeDtypeStruct((B_pad, K_pad), jnp.float32),
        grid=(num_f, num_b),
        in_specs=[
            pl.BlockSpec((tile_b, tile_f), lambda f, b: (b, f)),   # image block
            pl.BlockSpec((tile_f, D_pad), lambda f, b: (f, 0)),    # W': fetched once per f
            pl.BlockSpec((1, D_pad), lambda f, b: (0, 0)),         # folded bias (resident)
            pl.BlockSpec((D_pad, K_pad), lambda f, b: (0, 0)),     # text embedding (resident)
            pl.BlockSpec((1, 1), lambda f, b: (0, 0)),             # exp(logit_scale)
        ],
        out_specs=pl.BlockSpec((tile_b, K_pad), lambda f, b: (b, 0)),
        scratch_shapes=[pltpu.VMEM((num_b, tile_b, D_pad), jnp.float32)],
        compiler_params=pltpu.CompilerParams(
            dimension_semantics=("arbitrary", "parallel"),
            vmem_limit_bytes=vmem_limit,
        ),
        cost_estimate=cost,
    )(x, pack["w_fold"], pack["bias"], pack["temb"], pack["scale"])

    return out[:B, :K]


def _reference_f32(image, mean, std, w_enc, text_emb, logit_scale):
    B = image.shape[0]
    xn = (image - mean[None, :, None, None]) / std[None, :, None, None]
    emb = xn.reshape(B, -1) @ w_enc
    emb = emb / jnp.linalg.norm(emb, axis=-1, keepdims=True)
    return (emb @ text_emb) * jnp.exp(logit_scale)


def _reference_matched(image, mean, std, w_enc, text_emb, logit_scale):
    # Mirrors the kernel's dtype path: bf16 image/W'/emb_n/temb, f32 accumulate,
    # f32 folded bias, exp(logit_scale) applied after the second matmul.
    B, C, H, W = image.shape
    F = C * H * W
    hw = H * W
    mean_f = jnp.repeat(mean, hw)
    std_f = jnp.repeat(std, hw)
    w_fold = (w_enc / std_f[:, None]).astype(jnp.bfloat16).astype(jnp.float32)
    bias = -(mean_f / std_f) @ w_enc
    x = image.reshape(B, F).astype(jnp.bfloat16).astype(jnp.float32)
    emb = x @ w_fold + bias
    inv = jax.lax.rsqrt(jnp.sum(emb * emb, axis=-1, keepdims=True) + 1e-12)
    emb_n = (emb * inv).astype(jnp.bfloat16).astype(jnp.float32)
    temb = text_emb.astype(jnp.bfloat16).astype(jnp.float32)
    return (emb_n @ temb) * jnp.exp(logit_scale)


if __name__ == "__main__":
    # Small shapes consistent with the forward pass: batch=2, channels=3,
    # spatial=16x16, embedding dim=32, num classes=16.
    B, C, H, W = 2, 3, 16, 16
    D, K = 32, 16

    key = jax.random.PRNGKey(0)
    k_img, k_enc, k_txt = jax.random.split(key, 3)

    image = jax.random.uniform(k_img, (B, C, H, W), jnp.float32)            # pixels in [0,1]
    mean = jnp.array([0.48145466, 0.4578275, 0.40821073], jnp.float32)      # CLIP mean
    std = jnp.array([0.26862954, 0.26130258, 0.27577711], jnp.float32)      # CLIP std
    w_enc = jax.random.normal(k_enc, (C * H * W, D), jnp.float32) * 0.02    # synthetic encoder
    text_emb = jax.random.normal(k_txt, (D, K), jnp.float32)
    text_emb = text_emb / jnp.linalg.norm(text_emb, axis=0, keepdims=True)  # unit text embeds
    logit_scale = jnp.float32(jnp.log(100.0))                               # CLIP ~ ln(1/0.01)

    # One-time prepack (weight fold + pad + bf16 cast); tile_f=256 -> 3 pipelined F steps.
    pack = prepare_weights(mean, std, w_enc, text_emb, logit_scale, tile_f=256)

    logits = classification_forward(image, pack)
    logits = jax.block_until_ready(logits)
    assert logits.shape == (B, K)
    assert bool(jnp.all(jnp.isfinite(logits)))

    ref_m = _reference_matched(image, mean, std, w_enc, text_emb, logit_scale)
    ref_f = _reference_f32(image, mean, std, w_enc, text_emb, logit_scale)
    # Tight check against the dtype-matched reference (same bf16 rounding, f32 accumulate).
    assert jnp.allclose(logits, ref_m, atol=5e-2, rtol=1e-3)
    # Loose check against the exact f32 PyTorch-equivalent semantics.
    assert jnp.allclose(logits, ref_f, atol=1.5, rtol=5e-2)
    print("KERNEL_OK")
</pallas_src>

<mosaic_0001>
module attributes {stable_mosaic.version = 11 : i64} {
  func.func @_clf_kernel(%arg0: i32, %arg1: i32, %arg2: memref<8x256xf32, #tpu.memory_space<vmem>>, %arg3: memref<256x128xbf16, #tpu.memory_space<vmem>>, %arg4: memref<1x128xf32, #tpu.memory_space<vmem>>, %arg5: memref<128x128xbf16, #tpu.memory_space<vmem>>, %arg6: memref<1x1xf32, #tpu.memory_space<vmem>>, %arg7: memref<8x128xf32, #tpu.memory_space<vmem>>, %arg8: memref<1x8x128xf32, #tpu.memory_space<vmem>>) attributes {dimension_semantics = [#tpu.dimension_semantics<arbitrary>, #tpu.dimension_semantics<parallel>], iteration_bounds = array<i64: 3, 1>, scalar_prefetch = 0 : i64, scratch_operands = 1 : i64, tpu.core_type = #tpu.core_type<tc>, window_params = [{transform_indices = @transform_0, window_bounds = array<i64: 8, 256>}, {transform_indices = @transform_1, window_bounds = array<i64: 256, 128>}, {pipeline_mode = #tpu.pipeline_mode<synchronous>, transform_indices = @transform_2, window_bounds = array<i64: 1, 128>}, {pipeline_mode = #tpu.pipeline_mode<synchronous>, transform_indices = @transform_3, window_bounds = array<i64: 128, 128>}, {pipeline_mode = #tpu.pipeline_mode<synchronous>, transform_indices = @transform_4, window_bounds = array<i64: 1, 1>}, {transform_indices = @transform_5, window_bounds = array<i64: 8, 128>}]} {
    %c0_i32 = arith.constant 0 : i32
    %0 = arith.cmpi eq, %arg0, %c0_i32 : i32
    %1 = arith.extui %0 : i1 to i32
    %c0_i32_0 = arith.constant 0 : i32
    %2 = arith.cmpi ne, %1, %c0_i32_0 : i32
    scf.if %2 {
      %cst_9 = arith.constant 0.000000e+00 : f32
      %18 = vector.broadcast %cst_9 : f32 to vector<8x128xf32>
      %19 = arith.index_cast %arg1 : i32 to index
      %c0_10 = arith.constant 0 : index
      %c0_11 = arith.constant 0 : index
      %20 = vector.load %arg8[%19, %c0_10, %c0_11] : memref<1x8x128xf32, #tpu.memory_space<vmem>>, vector<1x8x128xf32>
      %21 = vector.shape_cast %20 : vector<1x8x128xf32> to vector<8x128xf32>
      %22 = vector.shape_cast %18 : vector<8x128xf32> to vector<1x8x128xf32>
      tpu.vector_store %arg8[%19, %c0_10, %c0_11], %22 {strides = array<i32>} : memref<1x8x128xf32, #tpu.memory_space<vmem>>, vector<1x8x128xf32>,
    } else {
    }
    %c0 = arith.constant 0 : index
    %c0_1 = arith.constant 0 : index
    %3 = vector.load %arg2[%c0, %c0_1] : memref<8x256xf32, #tpu.memory_space<vmem>>, vector<8x256xf32>
    %4 = arith.truncf %3 : vector<8x256xf32> to vector<8x256xbf16>
    %5 = arith.index_cast %arg1 : i32 to index
    %c0_2 = arith.constant 0 : index
    %c0_3 = arith.constant 0 : index
    %6 = vector.load %arg8[%5, %c0_2, %c0_3] : memref<1x8x128xf32, #tpu.memory_space<vmem>>, vector<1x8x128xf32>
    %7 = vector.shape_cast %6 : vector<1x8x128xf32> to vector<8x128xf32>
    %c0_4 = arith.constant 0 : index
    %c0_5 = arith.constant 0 : index
    %8 = vector.load %arg3[%c0_4, %c0_5] : memref<256x128xbf16, #tpu.memory_space<vmem>>, vector<256x128xbf16>
    %cst = arith.constant dense<0.000000e+00> : vector<8x128xf32>
    %9 = tpu.matmul %4, %8, %cst {dimension_numbers = #tpu.dot_dimension_numbers<[1], [0], [0], [1], [0, 0, 1, 1], [], []>} : vector<8x256xbf16>, vector<256x128xbf16>, vector<8x128xf32> -> vector<8x128xf32>
    %10 = arith.addf %7, %9 : vector<8x128xf32>
    %11 = arith.index_cast %arg1 : i32 to index
    %c0_6 = arith.constant 0 : index
    %c0_7 = arith.constant 0 : index
    %12 = vector.load %arg8[%11, %c0_6, %c0_7] : memref<1x8x128xf32, #tpu.memory_space<vmem>>, vector<1x8x128xf32>
    %13 = vector.shape_cast %12 : vector<1x8x128xf32> to vector<8x128xf32>
    %14 = vector.shape_cast %10 : vector<8x128xf32> to vector<1x8x128xf32>
    tpu.vector_store %arg8[%11, %c0_6, %c0_7], %14 {strides = array<i32>} : memref<1x8x128xf32, #tpu.memory_space<vmem>>, vector<1x8x128xf32>,
    %c2_i32 = arith.constant 2 : i32
    %15 = arith.cmpi eq, %arg0, %c2_i32 : i32
    %16 = arith.extui %15 : i1 to i32
    %c0_i32_8 = arith.constant 0 : i32
    %17 = arith.cmpi ne, %16, %c0_i32_8 : i32
    scf.if %17 {
      %18 = arith.index_cast %arg1 : i32 to index
      %c0_9 = arith.constant 0 : index
      %c0_10 = arith.constant 0 : index
      %19 = vector.load %arg8[%18, %c0_9, %c0_10] : memref<1x8x128xf32, #tpu.memory_space<vmem>>, vector<1x8x128xf32>
      %20 = vector.shape_cast %19 : vector<1x8x128xf32> to vector<8x128xf32>
      %c0_11 = arith.constant 0 : index
      %c0_12 = arith.constant 0 : index
      %21 = vector.load %arg4[%c0_11, %c0_12] : memref<1x128xf32, #tpu.memory_space<vmem>>, vector<1x128xf32>
      %22 = vector.broadcast %21 : vector<1x128xf32> to vector<8x128xf32>
      %23 = arith.addf %20, %22 : vector<8x128xf32>
      %24 = arith.mulf %23, %23 : vector<8x128xf32>
      %cst_13 = arith.constant dense<0.000000e+00> : vector<8xf32>
      %25 = vector.multi_reduction <add>, %24, %cst_13 [1] : vector<8x128xf32> to vector<8xf32>
      %26 = vector.shape_cast %25 : vector<8xf32> to vector<8x1xf32>
      %cst_14 = arith.constant 9.99999996E-13 : f32
      %27 = vector.broadcast %cst_14 : f32 to vector<8x1xf32>
      %28 = arith.addf %26, %27 : vector<8x1xf32>
      %29 = math.rsqrt %28 : vector<8x1xf32>
      %30 = vector.broadcast %29 : vector<8x1xf32> to vector<8x128xf32>
      %31 = arith.mulf %23, %30 : vector<8x128xf32>
      %32 = arith.truncf %31 : vector<8x128xf32> to vector<8x128xbf16>
      %c0_15 = arith.constant 0 : index
      %c0_16 = arith.constant 0 : index
      %33 = vector.load %arg5[%c0_15, %c0_16] : memref<128x128xbf16, #tpu.memory_space<vmem>>, vector<128x128xbf16>
      %cst_17 = arith.constant dense<0.000000e+00> : vector<8x128xf32>
      %34 = tpu.matmul %32, %33, %cst_17 {dimension_numbers = #tpu.dot_dimension_numbers<[1], [0], [0], [1], [0, 0, 1, 1], [], []>} : vector<8x128xbf16>, vector<128x128xbf16>, vector<8x128xf32> -> vector<8x128xf32>
      %c0_18 = arith.constant 0 : index
      %c0_19 = arith.constant 0 : index
      %35 = vector.load %arg6[%c0_18, %c0_19] : memref<1x1xf32, #tpu.memory_space<vmem>>, vector<1x1xf32>
      %36 = vector.extract %35[0, 0] : f32 from vector<1x1xf32>
      %37 = vector.broadcast %36 : f32 to vector<8x128xf32>
      %38 = arith.mulf %34, %37 : vector<8x128xf32>
      %c0_20 = arith.constant 0 : index
      %c0_21 = arith.constant 0 : index
      %39 = vector.load %arg7[%c0_20, %c0_21] : memref<8x128xf32, #tpu.memory_space<vmem>>, vector<8x128xf32>
      tpu.vector_store %arg7[%c0_20, %c0_21], %38 {strides = array<i32>} : memref<8x128xf32, #tpu.memory_space<vmem>>, vector<8x128xf32>,
    } else {
    }
    return
  }
  func.func @transform_0(%arg0: i32, %arg1: i32) -> (i32, i32) {
    %c0_i32 = arith.constant 0 : i32
    return %arg1, %arg0 : i32, i32
  }
  func.func @transform_1(%arg0: i32, %arg1: i32) -> (i32, i32) {
    %c0_i32 = arith.constant 0 : i32
    %c0_i32_0 = arith.constant 0 : i32
    return %arg0, %c0_i32 : i32, i32
  }
  func.func @transform_2(%arg0: i32, %arg1: i32) -> (i32, i32) {
    %c0_i32 = arith.constant 0 : i32
    %c0_i32_0 = arith.constant 0 : i32
    %c0_i32_1 = arith.constant 0 : i32
    return %c0_i32, %c0_i32_0 : i32, i32
  }
  func.func @transform_3(%arg0: i32, %arg1: i32) -> (i32, i32) {
    %c0_i32 = arith.constant 0 : i32
    %c0_i32_0 = arith.constant 0 : i32
    %c0_i32_1 = arith.constant 0 : i32
    return %c0_i32, %c0_i32_0 : i32, i32
  }
  func.func @transform_4(%arg0: i32, %arg1: i32) -> (i32, i32) {
    %c0_i32 = arith.constant 0 : i32
    %c0_i32_0 = arith.constant 0 : i32
    %c0_i32_1 = arith.constant 0 : i32
    return %c0_i32, %c0_i32_0 : i32, i32
  }
  func.func @transform_5(%arg0: i32, %arg1: i32) -> (i32, i32) {
    %c0_i32 = arith.constant 0 : i32
    %c0_i32_0 = arith.constant 0 : i32
    return %arg1, %c0_i32 : i32, i32
  }
}

</mosaic_0001>

<llo_original>
// kernel: tpu_custom_call.1
$region0: #{tpu_custom_call.1}
  #allocation0 [shape = 'u32[]', space=smem, size = 0x4, offset = 0x4, fixed_abs, tag = 'smem constant byte address 0x4 - core index']
  #allocation1 [shape = 'u32[72,128]{1,0:T(1,128)}', space=vmem, size = 0x9000, scoped, tag = 'internal scratch']
  #allocation2 [shape = 'f32[1,8,128]{2,1,0:T(8,128)}', space=vmem, size = 0x1000, scoped, tag = 'scratch operand']
  #allocation3 [shape = 'f32[1,1]{1,0:T(1,128)S(1)}', space=vmem, size = 0x200, scoped, tag = 'scoped memory for tpu_custom_call.1']
  %s0 = inlined_call_operand.hbm [shape: f32[8,768], index: 0, kind: input, shape index: {}]
  %s1 = inlined_call_operand.hbm [shape: bf16[768,128], index: 1, kind: input, shape index: {}]
  %s2 = inlined_call_operand.vmem [shape: f32[1,128], index: 2, kind: input, shape index: {}]
  %s3 = inlined_call_operand.hbm [shape: bf16[128,128], index: 3, kind: input, shape index: {}]
  %s4 = inlined_call_operand.<no memory space> [shape: f32[1,1], index: 4, kind: input, shape index: {}]
  %s5 = inlined_call_operand.hbm [shape: f32[8,128], index: 5, kind: output, shape index: {}]
  %s6 = sld [smem:[#allocation0]]
  $region73: #{tpu_custom_call.1} parent=0
    _
  %s8 = ssub.s32 1, %s6
  %s9 = scalar_select 0, %s8, %s6
  %v10 = vstv %s4
  %11 = vst [vmem:[#allocation3] sm:$0x1] %v10
  $region1: #{tpu_custom_call.1} parent=0
    #allocation4 [shape = 'u8[16384]{0}', space=vmem, size = 0x4000, scoped, tag = 'input window, operand 0']
    #allocation5 [shape = 's32[2]{0}', space=sflag, size = 0x8, scoped, tag = 'scoped memory for tpu_custom_call.1']
    #allocation6 [shape = 's32[2]{0}', space=sflag, size = 0x8, scoped, tag = 'scoped memory for tpu_custom_call.1']
    #allocation7 [shape = 'u8[131072]{0}', space=vmem, size = 0x20000, scoped, tag = 'input window, operand 1']
    #allocation8 [shape = 's32[2]{0}', space=sflag, size = 0x8, scoped, tag = 'scoped memory for tpu_custom_call.1']
    #allocation9 [shape = 'u8[32768]{0}', space=vmem, size = 0x8000, scoped, tag = 'input window, operand 3, single buffered']
    #allocation10 [shape = 'u8[4096]{0}', space=vmem, size = 0x1000, scoped, tag = 'output window, operand 0, single buffered']
    %12 = vsyncpa [#allocation5], 0
    %s13 = scalar_lea.sflag [#allocation5], 1
    %14 = vsyncpa %s13, 0
    %15 = vsyncpa [#allocation8], 0
    %s16 = scalar_lea.sflag [#allocation8], 1
    %17 = vsyncpa %s16, 0
    %18 = vsyncpa [#allocation6], 0
    loop: start=0, step=1, limit=5
    $region2: #{tpu_custom_call.1} parent=1 // loop_pre_header
      _
    $region3: #{tpu_custom_call.1} parent=1 // loop_header
      %s20 = sphi 0, %s24
      %p21 = scmp.ge.s32.totalorder %s20, 5
      %s27 = sphi 0, %s39
      %s28 = sphi 0, %s35
      %s29 = sphi 0, %s27
      %s30 = sphi 0, %s28
      %s31 = sphi 0, %s29
      %s32 = sphi 0, %s30
      %s44 = sphi 0, %s46
      %s47 = sphi 0, %s44
      %s48 = sphi 0, %s47
      %s64 = sphi 0, %s48
      %s70 = sphi 0, %s72
      %s73 = sphi 0, %s70
      %s74 = sphi 0, %s73
      %s90 = sphi 0, %s74
      %s94 = sphi 0, %s94
      %s96 = sphi 0, %s94
      %s97 = sphi 0, %s96
      %s111 = sphi 0, %s97
      %s115 = sphi 0, %s115
      %s117 = sphi 0, %s115
      %s118 = sphi 0, %s117
      %s132 = sphi 0, %s118
      %s136 = sphi 0, %s136
      %s138 = sphi 0, %s136
      %s139 = sphi 0, %s138
      %s153 = sphi 0, %s139
      %s159 = sphi 0, %s161
      %s162 = sphi 0, %s159
      %s163 = sphi 0, %s162
      %s179 = sphi 0, %s163
    $region4: #{tpu_custom_call.1} parent=1 // loop_header_branch
      %23 = sbr.rel (%p21) target = $region8
    $region5: #{tpu_custom_call.1} parent=1 // loop_body
      %s25 = ssub.s32 %s20, 1
      %s26 = ssub.s32 %s20, 2
      %s33 = sadd.s32 1, %s28
      %p34 = scmp.ge.s32.totalorder %s33, 1
      %s35 = scalar_select %p34, 0, %s33
      %s36 = sadd.s32 1, %s27
      %s37 = scalar_select %p34, %s36, %s27
      %p38 = scmp.ge.s32.totalorder %s37, 3
      %s39 = scalar_select %p38, 0, %s37
      %s40 = ssub.s32 %s28, %s35
      %s41 = ssub.s32 %s27, %s39
      %s42 = sor.u32 %s40, %s41
      %p43 = scmp.eq.s32.totalorder %s42, 0
      %s45 = sadd.s32 %s44, 1
      %s46 = scalar_select %p43, %s44, %s45
      %p49 = pneg %p43
      %p50 = scmp.eq.s32.totalorder %s20, 2
      %p51 = por %p49, %p50
      %p52 = scmp.ne.s32.totalorder %s44, %s47
      %p53 = scmp.eq.s32.totalorder %s20, 0
      %p54 = por %p52, %p53
      %p55 = scmp.ne.s32.totalorder %s44, %s47
      %p56 = scmp.eq.s32.totalorder %s25, 2
      %p57 = por %p55, %p56
      %p58 = scmp.ne.s32.totalorder %s47, %s48
      %p59 = scmp.eq.s32.totalorder %s25, 0
      %p60 = por %p58, %p59
      %p61 = scmp.ne.s32.totalorder %s47, %s48
      %p62 = scmp.eq.s32.totalorder %s26, 2
      %p63 = por %p61, %p62
      %p65 = scmp.ne.s32.totalorder %s48, %s64
      %p66 = scmp.eq.s32.totalorder %s26, 0
      %p67 = por %p65, %p66
      %s68 = ssub.s32 %s27, %s39
      %p69 = scmp.eq.s32.totalorder %s68, 0
      %s71 = sadd.s32 %s70, 1
      %s72 = scalar_select %p69, %s70, %s71
      %p75 = pneg %p69
      %p76 = scmp.eq.s32.totalorder %s20, 2
      %p77 = por %p75, %p76
      %p78 = scmp.ne.s32.totalorder %s70, %s73
      %p79 = scmp.eq.s32.totalorder %s20, 0
      %p80 = por %p78, %p79
      %p81 = scmp.ne.s32.totalorder %s70, %s73
      %p82 = scmp.eq.s32.totalorder %s25, 2
      %p83 = por %p81, %p82
      %p84 = scmp.ne.s32.totalorder %s73, %s74
      %p85 = scmp.eq.s32.totalorder %s25, 0
      %p86 = por %p84, %p85
      %p87 = scmp.ne.s32.totalorder %s73, %s74
      %p88 = scmp.eq.s32.totalorder %s26, 2
      %p89 = por %p87, %p88
      %p91 = scmp.ne.s32.totalorder %s74, %s90
      %p92 = scmp.eq.s32.totalorder %s26, 0
      %p93 = por %p91, %p92
      %s95 = sadd.s32 %s94, 1
      %p98 = scmp.eq.s32.totalorder %s20, 2
      %p99 = scmp.ne.s32.totalorder %s94, %s96
      %p100 = scmp.eq.s32.totalorder %s20, 0
      %p101 = por %p99, %p100
      %p102 = scmp.ne.s32.totalorder %s94, %s96
      %p103 = scmp.eq.s32.totalorder %s25, 2
      %p104 = por %p102, %p103
      %p105 = scmp.ne.s32.totalorder %s96, %s97
      %p106 = scmp.eq.s32.totalorder %s25, 0
      %p107 = por %p105, %p106
      %p108 = scmp.ne.s32.totalorder %s96, %s97
      %p109 = scmp.eq.s32.totalorder %s26, 2
      %p110 = por %p108, %p109
      %p112 = scmp.ne.s32.totalorder %s97, %s111
      %p113 = scmp.eq.s32.totalorder %s26, 0
      %p114 = por %p112, %p113
      %s116 = sadd.s32 %s115, 1
      %p119 = scmp.eq.s32.totalorder %s20, 2
      %p120 = scmp.ne.s32.totalorder %s115, %s117
      %p121 = scmp.eq.s32.totalorder %s20, 0
      %p122 = por %p120, %p121
      %p123 = scmp.ne.s32.totalorder %s115, %s117
      %p124 = scmp.eq.s32.totalorder %s25, 2
      %p125 = por %p123, %p124
      %p126 = scmp.ne.s32.totalorder %s117, %s118
      %p127 = scmp.eq.s32.totalorder %s25, 0
      %p128 = por %p126, %p127
      %p129 = scmp.ne.s32.totalorder %s117, %s118
      %p130 = scmp.eq.s32.totalorder %s26, 2
      %p131 = por %p129, %p130
      %p133 = scmp.ne.s32.totalorder %s118, %s132
      %p134 = scmp.eq.s32.totalorder %s26, 0
      %p135 = por %p133, %p134
      %s137 = sadd.s32 %s136, 1
      %p140 = scmp.eq.s32.totalorder %s20, 2
      %p141 = scmp.ne.s32.totalorder %s136, %s138
      %p142 = scmp.eq.s32.totalorder %s20, 0
      %p143 = por %p141, %p142
      %p144 = scmp.ne.s32.totalorder %s136, %s138
      %p145 = scmp.eq.s32.totalorder %s25, 2
      %p146 = por %p144, %p145
      %p147 = scmp.ne.s32.totalorder %s138, %s139
      %p148 = scmp.eq.s32.totalorder %s25, 0
      %p149 = por %p147, %p148
      %p150 = scmp.ne.s32.totalorder %s138, %s139
      %p151 = scmp.eq.s32.totalorder %s26, 2
      %p152 = por %p150, %p151
      %p154 = scmp.ne.s32.totalorder %s139, %s153
      %p155 = scmp.eq.s32.totalorder %s26, 0
      %p156 = por %p154, %p155
      %s157 = ssub.s32 %s28, %s35
      %p158 = scmp.eq.s32.totalorder %s157, 0
      %s160 = sadd.s32 %s159, 1
      %s161 = scalar_select %p158, %s159, %s160
      %p164 = pneg %p158
      %p165 = scmp.eq.s32.totalorder %s20, 2
      %p166 = por %p164, %p165
      %p167 = scmp.ne.s32.totalorder %s159, %s162
      %p168 = scmp.eq.s32.totalorder %s20, 0
      %p169 = por %p167, %p168
      %p170 = scmp.ne.s32.totalorder %s159, %s162
      %p171 = scmp.eq.s32.totalorder %s25, 2
      %p172 = por %p170, %p171
      %p173 = scmp.ne.s32.totalorder %s162, %s163
      %p174 = scmp.eq.s32.totalorder %s25, 0
      %p175 = por %p173, %p174
      %p176 = scmp.ne.s32.totalorder %s162, %s163
      %p177 = scmp.eq.s32.totalorder %s26, 2
      %p178 = por %p176, %p177
      %p180 = scmp.ne.s32.totalorder %s163, %s179
      %p181 = scmp.eq.s32.totalorder %s26, 0
      %p182 = por %p180, %p181
      %p183 = scmp.le.s32.totalorder 1, %s20
      %p184 = scmp.lt.s32.totalorder %s20, 4
      %p185 = pnand %p183, %p184
      %p186 = pneg %p185
      // Predicated region
      $region9: #{tpu_custom_call.1} parent=5 // pred_check
        _
      $region10: #{tpu_custom_call.1} parent=5 // pred_check_branch
        %188 = sbr.rel (%p185) target = $region12
      $region11: #{tpu_custom_call.1} parent=5 // pred_region
        %s189 = ssub.s32 %s20, 1
        // Predicated region
        $region13: #{tpu_custom_call.1} parent=11 // pred_check
          %p190 = pneg %p107
        $region14: #{tpu_custom_call.1} parent=11 // pred_check_branch
          %192 = sbr.rel (%p190) target = $region16
        $region15: #{tpu_custom_call.1} parent=11 // pred_region
          _
        $region16: #{tpu_custom_call.1} parent=11 // pred_fallthru
          _
        // Predicated region
        $region17: #{tpu_custom_call.1} parent=11 // pred_check
          %p193 = pneg %p128
        $region18: #{tpu_custom_call.1} parent=11 // pred_check_branch
          %195 = sbr.rel (%p193) target = $region20
        $region19: #{tpu_custom_call.1} parent=11 // pred_region
          %197 = vsyncadd [#allocation8], 0
          %s198 = sshll.u32 %s3, 4
          %s199 = int_to_ptr.hbm [resolvable:$true] %s198
          %s200 = sshll.u32 [#allocation9], 4
          %s201 = int_to_ptr.vmem [resolvable:$true] %s200
          %206 = dma.hbm_to_vmem [thread:$0]  %s199, 1024, %s201, [#allocation8], 64, 64, 4
        $region20: #{tpu_custom_call.1} parent=11 // pred_fallthru
          _
        // Predicated region
        $region21: #{tpu_custom_call.1} parent=11 // pred_check
          %p207 = pneg %p149
        $region22: #{tpu_custom_call.1} parent=11 // pred_check_branch
          %209 = sbr.rel (%p207) target = $region24
        $region23: #{tpu_custom_call.1} parent=11 // pred_region
          _
        $region24: #{tpu_custom_call.1} parent=11 // pred_fallthru
          _
      $region12: #{tpu_custom_call.1} parent=5 // pred_fallthru
        _
      %p210 = scmp.lt.s32.totalorder %s20, 3
      // Predicated region
      $region25: #{tpu_custom_call.1} parent=5 // pred_check
        %p211 = pneg %p210
      $region26: #{tpu_custom_call.1} parent=5 // pred_check_branch
        %213 = sbr.rel (%p211) target = $region28
      $region27: #{tpu_custom_call.1} parent=5 // pred_region
        // Predicated region
        $region29: #{tpu_custom_call.1} parent=27 // pred_check
          %p214 = pneg %p54
        $region30: #{tpu_custom_call.1} parent=27 // pred_check_branch
          %216 = sbr.rel (%p214) target = $region32
        $region31: #{tpu_custom_call.1} parent=27 // pred_region
          %s217 = sand.u32 %s44, 1
          %s218 = scalar_lea.sflag [#allocation5], %s217
          %s219 = sand.u32 %s44, 1
          %s220 = smul.addr %s219, 16
          %s221 = scalar_lea.vmem [#allocation4], %s220
          %s222 = smul.u32 2, %s27
          %224 = vsyncadd %s218, 0
          %s225 = smul.addr %s28, 6
          %s226 = sadd.s32 %s222, %s225
          %s227 = smul.addr %s226, 8
          %s228 = scalar_lea.hbm %s0, %s227
          %s230 = sshll.u32 %s228, 4
          %s231 = int_to_ptr.hbm [resolvable:$true] %s230
          %s232 = sshll.u32 %s221, 4
          %s233 = int_to_ptr.vmem [resolvable:$true] %s232
          %235 = dma.hbm_to_vmem [thread:$0]  %s231, 256, %s233, %s218
        $region32: #{tpu_custom_call.1} parent=27 // pred_fallthru
          _
        // Predicated region
        $region33: #{tpu_custom_call.1} parent=27 // pred_check
          %p236 = pneg %p80
        $region34: #{tpu_custom_call.1} parent=27 // pred_check_branch
          %238 = sbr.rel (%p236) target = $region36
        $region35: #{tpu_custom_call.1} parent=27 // pred_region
          %s239 = sand.u32 %s20, 1
          %s240 = scalar_lea.sflag [#allocation8], %s239
          %s241 = sand.u32 %s70, 1
          %s242 = smul.addr %s241, 128
          %s243 = scalar_lea.vmem [#allocation7], %s242
          %s244 = smul.u32 32, %s27
          %246 = vsyncadd %s240, 0
          %s247 = smul.addr %s244, 4
          %s248 = scalar_lea.hbm %s1, %s247
          %s249 = sshll.u32 %s248, 4
          %s250 = int_to_ptr.hbm [resolvable:$true] %s249
          %s251 = sshll.u32 %s243, 4
          %s252 = int_to_ptr.vmem [resolvable:$true] %s251
          %257 = dma.hbm_to_vmem [thread:$0]  %s250, 2048, %s252, %s240, 64, 64, 4
        $region36: #{tpu_custom_call.1} parent=27 // pred_fallthru
          _
      $region28: #{tpu_custom_call.1} parent=5 // pred_fallthru
        _
      %p258 = scmp.le.s32.totalorder 1, %s20
      %p259 = scmp.lt.s32.totalorder %s20, 4
      %p260 = pnand %p258, %p259
      %p261 = pneg %p260
      // Predicated region
      $region37: #{tpu_custom_call.1} parent=5 // pred_check
        _
      $region38: #{tpu_custom_call.1} parent=5 // pred_check_branch
        %263 = sbr.rel (%p260) target = $region40
      $region39: #{tpu_custom_call.1} parent=5 // pred_region
        %s264 = ssub.s32 %s20, 1
        %s265 = sand.u32 %s47, 1
        %s266 = scalar_lea.sflag [#allocation5], %s265
        %s267 = sand.u32 %s47, 1
        %s268 = smul.addr %s267, 16
        %s269 = scalar_lea.vmem [#allocation4], %s268
        // Predicated region
        $region41: #{tpu_custom_call.1} parent=39 // pred_check
          %p270 = pneg %p60
        $region42: #{tpu_custom_call.1} parent=39 // pred_check_branch
          %272 = sbr.rel (%p270) target = $region44
        $region43: #{tpu_custom_call.1} parent=39 // pred_region
          %274 = dma.done %s266, 256
        $region44: #{tpu_custom_call.1} parent=39 // pred_fallthru
          _
        %s275 = sand.u32 %s25, 1
        %s276 = scalar_lea.sflag [#allocation8], %s275
        %s277 = sand.u32 %s73, 1
        %s278 = smul.addr %s277, 128
        %s279 = scalar_lea.vmem [#allocation7], %s278
        // Predicated region
        $region45: #{tpu_custom_call.1} parent=39 // pred_check
          %p280 = pneg %p86
        $region46: #{tpu_custom_call.1} parent=39 // pred_check_branch
          %282 = sbr.rel (%p280) target = $region48
        $region47: #{tpu_custom_call.1} parent=39 // pred_region
          %284 = dma.done %s276, 2048
        $region48: #{tpu_custom_call.1} parent=39 // pred_fallthru
          _
        // Predicated region
        $region49: #{tpu_custom_call.1} parent=39 // pred_check
          %p285 = pneg %p128
        $region50: #{tpu_custom_call.1} parent=39 // pred_check_branch
          %287 = sbr.rel (%p285) target = $region52
        $region51: #{tpu_custom_call.1} parent=39 // pred_region
          %289 = dma.done [#allocation8], 1024
        $region52: #{tpu_custom_call.1} parent=39 // pred_fallthru
          _
        %s290 = sand.u32 %s47, 1
        %s291 = scalar_lea.sflag [#allocation5], %s290
        %s292 = sand.u32 %s47, 1
        %s293 = smul.addr %s292, 16
        %s294 = scalar_lea.vmem [#allocation4], %s293
        %p295 = pneg %p60
        %p296 = pneg %p57
        %s297 = sand.u32 %s25, 1
        %s298 = scalar_lea.sflag [#allocation8], %s297
        %s299 = sand.u32 %s73, 1
        %s300 = smul.addr %s299, 128
        %s301 = scalar_lea.vmem [#allocation7], %s300
        %p302 = pneg %p86
        %p303 = pneg %p83
        %p304 = pneg %p107
        %p305 = pneg %p104
        %p306 = pneg %p128
        %p307 = pneg %p125
        %p308 = pneg %p149
        %p309 = pneg %p146
        %p310 = pneg %p175
        %p311 = pneg %p172
        %s312 = smul.u32 2, %s29
        %s313 = smul.u32 32, %s29
        %p314 = scmp.eq.s32.totalorder %s29, 0
        // Predicated region
        $region53: #{tpu_custom_call.1} parent=39 // pred_check
          %p315 = pneg %p314
        $region54: #{tpu_custom_call.1} parent=39 // pred_check_branch
          %317 = sbr.rel (%p315) target = $region56
        $region55: #{tpu_custom_call.1} parent=39 // pred_region
          %s318 = smul.u32 %s30, 8
          %s319 = scalar_lea.vmem [#allocation2], %s318
          %320 = vst [vmem:[%s319] sm:$0xff] 0.0
        $region56: #{tpu_custom_call.1} parent=39 // pred_fallthru
          _
        %v321 = vld [vmem:[%s269] sm:$0xff]
        %v322 = vld [vmem:[%s269 + $0x8] sm:$0xff]
        %v323 = vpack.c.bf16 %v321, %v321
        %v324 = vpack.c.bf16 %v322, %v322
        %s325 = smul.u32 %s30, 8
        %s326 = scalar_lea.vmem [#allocation2], %s325
        %v327 = vld [vmem:[%s326] sm:$0xff]
        %v328 = vld [vmem:[%s279] sm:$0xf]
        %v329 = vld [vmem:[%s279 + $0x4] sm:$0xf]
        %v330 = vld [vmem:[%s279 + $0x8] sm:$0xf]
        %v331 = vld [vmem:[%s279 + $0xc] sm:$0xf]
        %v332 = vld [vmem:[%s279 + $0x10] sm:$0xf]
        %v333 = vld [vmem:[%s279 + $0x14] sm:$0xf]
        %v334 = vld [vmem:[%s279 + $0x18] sm:$0xf]
        %v335 = vld [vmem:[%s279 + $0x1c] sm:$0xf]
        %v336 = vld [vmem:[%s279 + $0x20] sm:$0xf]
        %v337 = vld [vmem:[%s279 + $0x24] sm:$0xf]
        %v338 = vld [vmem:[%s279 + $0x28] sm:$0xf]
        %v339 = vld [vmem:[%s279 + $0x2c] sm:$0xf]
        %v340 = vld [vmem:[%s279 + $0x30] sm:$0xf]
        %v341 = vld [vmem:[%s279 + $0x34] sm:$0xf]
        %v342 = vld [vmem:[%s279 + $0x38] sm:$0xf]
        %v343 = vld [vmem:[%s279 + $0x3c] sm:$0xf]
        %v344 = vld [vmem:[%s279 + $0x40] sm:$0xf]
        %v345 = vld [vmem:[%s279 + $0x44] sm:$0xf]
        %v346 = vld [vmem:[%s279 + $0x48] sm:$0xf]
        %v347 = vld [vmem:[%s279 + $0x4c] sm:$0xf]
        %v348 = vld [vmem:[%s279 + $0x50] sm:$0xf]
        %v349 = vld [vmem:[%s279 + $0x54] sm:$0xf]
        %v350 = vld [vmem:[%s279 + $0x58] sm:$0xf]
        %v351 = vld [vmem:[%s279 + $0x5c] sm:$0xf]
        %v352 = vld [vmem:[%s279 + $0x60] sm:$0xf]
        %v353 = vld [vmem:[%s279 + $0x64] sm:$0xf]
        %v354 = vld [vmem:[%s279 + $0x68] sm:$0xf]
        %v355 = vld [vmem:[%s279 + $0x6c] sm:$0xf]
        %v356 = vld [vmem:[%s279 + $0x70] sm:$0xf]
        %v357 = vld [vmem:[%s279 + $0x74] sm:$0xf]
        %v358 = vld [vmem:[%s279 + $0x78] sm:$0xf]
        %v359 = vld [vmem:[%s279 + $0x7c] sm:$0xf]
        %v392 = vunpack.c.l.b16 %v328
        %v393 = vunpack.c.l.b16 %v329
        %v394 = vunpack.c.l.b16 %v330
        %v395 = vunpack.c.l.b16 %v331
        %v396 = vunpack.c.l.b16 %v332
        %v397 = vunpack.c.l.b16 %v333
        %v398 = vunpack.c.l.b16 %v334
        %v399 = vunpack.c.l.b16 %v335
        %v400 = vunpack.c.l.b16 %v336
        %v401 = vunpack.c.l.b16 %v337
        %v402 = vunpack.c.l.b16 %v338
        %v403 = vunpack.c.l.b16 %v339
        %v404 = vunpack.c.l.b16 %v340
        %v405 = vunpack.c.l.b16 %v341
        %v406 = vunpack.c.l.b16 %v342
        %v407 = vunpack.c.l.b16 %v343
        %v408 = vunpack.c.l.b16 %v344
        %v409 = vunpack.c.l.b16 %v345
        %v410 = vunpack.c.l.b16 %v346
        %v411 = vunpack.c.l.b16 %v347
        %v412 = vunpack.c.l.b16 %v348
        %v413 = vunpack.c.l.b16 %v349
        %v414 = vunpack.c.l.b16 %v350
        %v415 = vunpack.c.l.b16 %v351
        %v416 = vunpack.c.l.b16 %v352
        %v417 = vunpack.c.l.b16 %v353
        %v418 = vunpack.c.l.b16 %v354
        %v419 = vunpack.c.l.b16 %v355
        %v420 = vunpack.c.l.b16 %v356
        %v421 = vunpack.c.l.b16 %v357
        %v422 = vunpack.c.l.b16 %v358
        %v423 = vunpack.c.l.b16 %v359
        %v424 = vpack.c.b16 %v393, %v392
        %v425 = vpack.c.b16 %v395, %v394
        %v426 = vpack.c.b16 %v397, %v396
        %v427 = vpack.c.b16 %v399, %v398
        %v428 = vpack.c.b16 %v401, %v400
        %v429 = vpack.c.b16 %v403, %v402
        %v430 = vpack.c.b16 %v405, %v404
        %v431 = vpack.c.b16 %v407, %v406
        %v432 = vpack.c.b16 %v409, %v408
        %v433 = vpack.c.b16 %v411, %v410
        %v434 = vpack.c.b16 %v413, %v412
        %v435 = vpack.c.b16 %v415, %v414
        %v436 = vpack.c.b16 %v417, %v416
        %v437 = vpack.c.b16 %v419, %v418
        %v438 = vpack.c.b16 %v421, %v420
        %v439 = vpack.c.b16 %v423, %v422
        %456 = vmatpush.bf16.msra.mxu0 %v431
        %457 = vmatpush.bf16.msra.mxu0 %v430
        %458 = vmatpush.bf16.msra.mxu0 %v429
        %459 = vmatpush.bf16.msra.mxu0 %v428
        %460 = vmatpush.bf16.msra.mxu0 %v427
        %461 = vmatpush.bf16.msra.mxu0 %v426
        %462 = vmatpush.bf16.msra.mxu0 %v425
        %463 = vmatpush.bf16.msra.mxu0 %v424
        %464 = vmatmul.bf16.gmra.mxu0 %v323
        %v465 = vpop.f32.mrf.mxu0
        %v466 = vadd.f32 0.0, %v465
        %v467 = vpop.f32.mrf.mxu0
        %468 = vdwg.mxu0
        %469 = vmatpush.bf16.msra.mxu0 %v439
        %470 = vmatpush.bf16.msra.mxu0 %v438
        %471 = vmatpush.bf16.msra.mxu0 %v437
        %472 = vmatpush.bf16.msra.mxu0 %v436
        %473 = vmatpush.bf16.msra.mxu0 %v435
        %474 = vmatpush.bf16.msra.mxu0 %v434
        %475 = vmatpush.bf16.msra.mxu0 %v433
        %476 = vmatpush.bf16.msra.mxu0 %v432
        %477 = vmatmul.bf16.gmra.mxu0 %v324
        %v478 = vpop.f32.mrf.mxu0
        %v479 = vadd.f32 %v466, %v478
        %v480 = vpop.f32.mrf.mxu0
        %481 = vdwg.mxu0
        %v482 = vadd.f32 %v327, %v479
        %483 = vst [vmem:[%s326] sm:$0xff] %v482
        %p484 = scmp.eq.s32.totalorder %s29, 2
        // Predicated region
        $region57: #{tpu_custom_call.1} parent=39 // pred_check
          %p485 = pneg %p484
        $region58: #{tpu_custom_call.1} parent=39 // pred_check_branch
          %487 = sbr.rel (%p485) target = $region60
        $region59: #{tpu_custom_call.1} parent=39 // pred_region
          %v488 = vld [vmem:[%s326] sm:$0xff]
          %v489 = vld [vmem:[%s2] sm:$0x1]
          %v491 = vperm.slane %v489, 0
          %v493 = vadd.f32 %v488, %v491
          %v494 = vmul.f32 %v493, %v493
          %495 = vadd.xlane.f32.xlu0 %v494
          %v496 = vpop.xlane.xlu0 %495
          %v497 = vadd.f32 %v496, 1e-12
          %v498 = vrsqrt.pop %v497
          %v499 = vmul.f32 %v498, %v497
          %v500 = vmul.f32 %v499, %v498
          %v501 = vmul.f32 0.5, %v500
          %v502 = vsub.f32 1.5, %v501
          %v503 = vmul.f32 %v498, %v502
          %vm504 = vweird.f32 %v497
          %vm505 = vweird.f32 %v498
          %vm506 = vmor %vm504, %vm505
          %v507 = vsel %vm506, %v498, %v503
          %v508 = vmul.f32 %v493, %v507
          %v509 = vpack.c.bf16 %v508, %v508
          %v510 = vld [vmem:[#allocation9] sm:$0xf]
          %v511 = vld [vmem:[#allocation9 + $0x4] sm:$0xf]
          %v512 = vld [vmem:[#allocation9 + $0x8] sm:$0xf]
          %v513 = vld [vmem:[#allocation9 + $0xc] sm:$0xf]
          %v514 = vld [vmem:[#allocation9 + $0x10] sm:$0xf]
          %v515 = vld [vmem:[#allocation9 + $0x14] sm:$0xf]
          %v516 = vld [vmem:[#allocation9 + $0x18] sm:$0xf]
          %v517 = vld [vmem:[#allocation9 + $0x1c] sm:$0xf]
          %v518 = vld [vmem:[#allocation9 + $0x20] sm:$0xf]
          %v519 = vld [vmem:[#allocation9 + $0x24] sm:$0xf]
          %v520 = vld [vmem:[#allocation9 + $0x28] sm:$0xf]
          %v521 = vld [vmem:[#allocation9 + $0x2c] sm:$0xf]
          %v522 = vld [vmem:[#allocation9 + $0x30] sm:$0xf]
          %v523 = vld [vmem:[#allocation9 + $0x34] sm:$0xf]
          %v524 = vld [vmem:[#allocation9 + $0x38] sm:$0xf]
          %v525 = vld [vmem:[#allocation9 + $0x3c] sm:$0xf]
          %v542 = vunpack.c.l.b16 %v510
          %v543 = vunpack.c.l.b16 %v511
          %v544 = vunpack.c.l.b16 %v512
          %v545 = vunpack.c.l.b16 %v513
          %v546 = vunpack.c.l.b16 %v514
          %v547 = vunpack.c.l.b16 %v515
          %v548 = vunpack.c.l.b16 %v516
          %v549 = vunpack.c.l.b16 %v517
          %v550 = vunpack.c.l.b16 %v518
          %v551 = vunpack.c.l.b16 %v519
          %v552 = vunpack.c.l.b16 %v520
          %v553 = vunpack.c.l.b16 %v521
          %v554 = vunpack.c.l.b16 %v522
          %v555 = vunpack.c.l.b16 %v523
          %v556 = vunpack.c.l.b16 %v524
          %v557 = vunpack.c.l.b16 %v525
          %v558 = vpack.c.b16 %v543, %v542
          %v559 = vpack.c.b16 %v545, %v544
          %v560 = vpack.c.b16 %v547, %v546
          %v561 = vpack.c.b16 %v549, %v548
          %v562 = vpack.c.b16 %v551, %v550
          %v563 = vpack.c.b16 %v553, %v552
          %v564 = vpack.c.b16 %v555, %v554
          %v565 = vpack.c.b16 %v557, %v556
          %574 = vmatpush.bf16.msra.mxu0 %v565
          %575 = vmatpush.bf16.msra.mxu0 %v564
          %576 = vmatpush.bf16.msra.mxu0 %v563
          %577 = vmatpush.bf16.msra.mxu0 %v562
          %578 = vmatpush.bf16.msra.mxu0 %v561
          %579 = vmatpush.bf16.msra.mxu0 %v560
          %580 = vmatpush.bf16.msra.mxu0 %v559
          %581 = vmatpush.bf16.msra.mxu0 %v558
          %582 = vmatmul.bf16.gmra.mxu0 %v509
          %v583 = vpop.f32.mrf.mxu0
          %v584 = vadd.f32 0.0, %v583
          %v585 = vpop.f32.mrf.mxu0
          %586 = vdwg.mxu0
          %v587 = vld [vmem:[#allocation3] sm:$0x1]
          %s588 = vtos %v587
          %v589 = vstv %s588
          %v590 = vmul.f32 %v584, %v589
          %591 = vst [vmem:[#allocation10] sm:$0xff] %v590
        $region60: #{tpu_custom_call.1} parent=39 // pred_fallthru
          _
        // Predicated region
        $region61: #{tpu_custom_call.1} parent=39 // pred_check
          %p592 = pneg %p172
        $region62: #{tpu_custom_call.1} parent=39 // pred_check_branch
          %594 = sbr.rel (%p592) target = $region64
        $region63: #{tpu_custom_call.1} parent=39 // pred_region
          %596 = vsyncadd [#allocation6], 0
          %s597 = smul.addr %s30, 8
          %s598 = scalar_lea.hbm %s5, %s597
          %s600 = sshll.u32 [#allocation10], 4
          %s601 = int_to_ptr.vmem [resolvable:$true] %s600
          %s602 = sshll.u32 %s598, 4
          %s603 = int_to_ptr.hbm [resolvable:$true] %s602
          %605 = dma.vmem_to_hbm [thread:$0]  %s601, 128, %s603, [#allocation6]
        $region64: #{tpu_custom_call.1} parent=39 // pred_fallthru
          _
        // Predicated region
        $region65: #{tpu_custom_call.1} parent=39 // pred_check
          %p606 = pneg %p172
        $region66: #{tpu_custom_call.1} parent=39 // pred_check_branch
          %608 = sbr.rel (%p606) target = $region68
        $region67: #{tpu_custom_call.1} parent=39 // pred_region
          %610 = dma.done [#allocation6], 128
        $region68: #{tpu_custom_call.1} parent=39 // pred_fallthru
          _
      $region40: #{tpu_custom_call.1} parent=5 // pred_fallthru
        _
      %p611 = scmp.le.s32.totalorder 2, %s20
      // Predicated region
      $region69: #{tpu_custom_call.1} parent=5 // pred_check
        %p612 = pneg %p611
      $region70: #{tpu_custom_call.1} parent=5 // pred_check_branch
        %614 = sbr.rel (%p612) target = $region72
      $region71: #{tpu_custom_call.1} parent=5 // pred_region
        %s615 = ssub.s32 %s20, 2
      $region72: #{tpu_custom_call.1} parent=5 // pred_fallthru
        _
    $region6: #{tpu_custom_call.1} parent=1 // loop_footer
      %s24 = sadd.s32 1, %s20
    $region7: #{tpu_custom_call.1} parent=1 // loop_footer_branch
      %19 = sbr.rel target = $region3
    $region8: #{tpu_custom_call.1} parent=1 // loop_exit
      _
    %616 = vsyncpa [#allocation5], 1
    %s617 = scalar_lea.sflag [#allocation5], 1
    %618 = vsyncpa %s617, 1
    %619 = vsyncpa [#allocation8], 1
    %s620 = scalar_lea.sflag [#allocation8], 1
    %621 = vsyncpa %s620, 1
    %622 = vsyncpa [#allocation6], 1
    %s623 = scalar_lea.sflag [#allocation6], 1
    %624 = vsyncpa %s623, 1

</llo_original>
